<compile_context>
chip_gen: v7x
topology: tpu7x:2x2x1
jax: 0.10.0
libtpu: 0.0.40
codegen_flags: <defaults>
</compile_context>

<pallas_src>
import functools

import jax
import jax.numpy as jnp
from jax.experimental import pallas as pl
from jax.experimental.pallas import tpu as pltpu

_MIB = 1024 * 1024


def _vmem_limit_bytes():
    # Generation-aware scoped-VMEM limit: ~half of physical VMEM, capped at 64 MiB.
    # v5e/v6e (128 MiB physical) -> 64 MiB; v7x (64 MiB physical) -> 32 MiB.
    try:
        cap = int(pltpu.get_tpu_info().vmem_capacity_bytes)
    except Exception:
        cap = 64 * _MIB
    return int(max(16 * _MIB, min(64 * _MIB, cap // 2)))


_VMEM_LIMIT = _vmem_limit_bytes()
# Per-block byte budget: big enough to amortize the ~0.35us per-grid-step overhead even at
# v7x HBM speeds, small enough that ~4 live block buffers + f32 temporaries fit scoped VMEM.
_BLOCK_BYTE_BUDGET = min(4 * _MIB, _VMEM_LIMIT // 8)
_MIN_GRID_STEPS = 4          # 2 TensorCores (v7x) x double-buffered pipeline
_MIN_SPLIT_BYTES = 1 * _MIB  # only enforce the minimum grid size on non-tiny tensors


# ----------------------------------------------------------------------------- kernels


def _l2n_nchw_kernel(x_ref, o_ref, *, eps):
    # Block view: (T_N, C, T_HW).  Reduce over channels (PyTorch dim=1) on sublanes.
    x = x_ref[...]
    xf = x.astype(jnp.float32)
    sumsq = jnp.sum(xf * xf, axis=1, keepdims=True)              # (T_N, 1, T_HW), f32
    inv = pl.reciprocal(jnp.sqrt(sumsq) + eps, approx=False)     # exact: matches x/(norm+eps)
    if x.dtype == jnp.float32:
        o_ref[...] = (xf * inv).astype(o_ref.dtype)
    else:
        # Low-precision input: broadcast multiply in the native dtype (no full-tile f32 result);
        # the norm itself was accumulated in f32 above.
        o_ref[...] = (x * inv.astype(x.dtype)).astype(o_ref.dtype)


def _l2n_2d_kernel(x_ref, o_ref, *, eps):
    # Block view: (T_N, D).  Reduce over the feature axis (PyTorch dim=1), which lives on lanes.
    x = x_ref[...]
    xf = x.astype(jnp.float32)
    sumsq = jnp.sum(xf * xf, axis=-1, keepdims=True)             # (T_N, 1), f32
    inv = pl.reciprocal(jnp.sqrt(sumsq) + eps, approx=False)
    if x.dtype == jnp.float32:
        o_ref[...] = (xf * inv).astype(o_ref.dtype)
    else:
        o_ref[...] = (x * inv.astype(x.dtype)).astype(o_ref.dtype)


def _rownorm_accum_kernel(x_ref, inv_ref, *, eps):
    # Two-pass fallback, pass 1: accumulate per-row sum of squares over D tiles (last,
    # 'arbitrary' grid axis); at the last tile turn it into 1 / (||x|| + eps) in place.
    j = pl.program_id(1)

    @pl.when(j == 0)
    def _():
        inv_ref[...] = jnp.zeros_like(inv_ref)

    xf = x_ref[...].astype(jnp.float32)
    inv_ref[...] += jnp.sum(xf * xf, axis=-1, keepdims=True)

    @pl.when(j == pl.num_programs(1) - 1)
    def _():
        inv_ref[...] = pl.reciprocal(jnp.sqrt(inv_ref[...]) + eps, approx=False)


def _rowscale_kernel(x_ref, inv_ref, o_ref):
    # Two-pass fallback, pass 2: elementwise broadcast scale.
    x = x_ref[...]
    inv = inv_ref[...]
    if x.dtype == jnp.float32:
        o_ref[...] = (x * inv).astype(o_ref.dtype)
    else:
        o_ref[...] = (x * inv.astype(x.dtype)).astype(o_ref.dtype)


# ----------------------------------------------------------------------------- tiling helpers


def _largest_divisor(n, upper):
    """Largest divisor of n that is <= upper (always >= 1).  O(sqrt(n)) trace-time cost."""
    n = int(n)
    upper = max(1, min(n, int(upper)))
    if upper >= n:
        return n
    best = 1
    i = 1
    while i * i <= n:
        if n % i == 0:
            if i <= upper and i > best:
                best = i
            j = n // i
            if j <= upper and j > best:
                best = j
        i += 1
    return best


def _shrink_for_min_steps(n, tile, other_steps, total_bytes):
    """Shrink `tile` (a divisor of n) so the grid has >= _MIN_GRID_STEPS total steps.

    Only applied to tensors worth splitting (v7x has 2 TensorCores and the pipeline needs
    >= 2 steps per core for DMA/compute overlap)."""
    if total_bytes < _MIN_SPLIT_BYTES:
        return tile
    while other_steps * (n // tile) < _MIN_GRID_STEPS and tile > 1:
        tile = _largest_divisor(n, max(1, tile // 2))
    return tile


def _cost_estimate(n_elems, n_vectors, itemsize):
    # ~3 flops per element (square, add-reduce, scale); sqrt+recip per normalized vector.
    return pl.CostEstimate(
        flops=3 * n_elems,
        transcendentals=n_vectors,
        bytes_accessed=2 * n_elems * itemsize,
    )


# ----------------------------------------------------------------------------- NCHW path


def _l2n_nchw(xr, eps):
    N, C, HW = xr.shape
    itemsize = xr.dtype.itemsize

    padded = False
    HW_p = HW
    if HW % 128 != 0 and C * HW * itemsize > _BLOCK_BYTE_BUDGET:
        # Ragged HW that can't stay lane-unsplit within the budget: zero-pad to a lane-tileable
        # multiple of 128 (zero columns have zero norm contribution and are sliced off below).
        HW_p = ((HW + 127) // 128) * 128
        xr = jnp.pad(xr, ((0, 0), (0, 0), (0, HW_p - HW)))
        padded = True

    # Lane tile: largest 128-multiple divisor of HW whose (1, C, t_hw) slab fits the budget.
    if HW_p % 128 == 0:
        cap_lanes = max(128, (_BLOCK_BYTE_BUDGET // max(1, C * itemsize)) // 128 * 128)
        t_hw = 128 * _largest_divisor(HW_p // 128, min(HW_p, cap_lanes) // 128)
    else:
        t_hw = HW_p  # small ragged HW: whole lane extent in one go

    total_bytes = N * C * HW_p * itemsize

    # Batch tile: pack several batch elements per block (leading dim has no (8,128) constraint).
    max_tn = max(1, _BLOCK_BYTE_BUDGET // max(1, C * t_hw * itemsize))
    t_n = _largest_divisor(N, max_tn)

    # Guarantee a multi-step grid on big tensors (v7x megacore + pipeline depth): split the
    # batch axis first (keeps lane runs long), then the lane axis if needed.
    t_n = _shrink_for_min_steps(N, t_n, HW_p // t_hw, total_bytes)
    if HW_p % 128 == 0 and t_hw > 128:
        tb = _shrink_for_min_steps(HW_p // 128, t_hw // 128, N // t_n, total_bytes)
        t_hw = tb * 128

    grid = (N // t_n, HW_p // t_hw)
    out = pl.pallas_call(
        functools.partial(_l2n_nchw_kernel, eps=eps),
        out_shape=jax.ShapeDtypeStruct((N, C, HW_p), xr.dtype),
        grid_spec=pl.GridSpec(
            grid=grid,
            in_specs=[pl.BlockSpec((t_n, C, t_hw), lambda n, h: (n, 0, h))],
            out_specs=pl.BlockSpec((t_n, C, t_hw), lambda n, h: (n, 0, h)),
        ),
        compiler_params=pltpu.CompilerParams(
            dimension_semantics=("parallel", "parallel"),
            vmem_limit_bytes=_VMEM_LIMIT,
        ),
        cost_estimate=_cost_estimate(N * C * HW_p, N * HW_p, itemsize),
    )(xr)
    return out[:, :, :HW] if padded else out


# ----------------------------------------------------------------------------- 2D path


def _l2n_2d_two_pass(x, eps, t_n):
    """D-tiled fallback for (N, D) inputs whose single-pass block would not fit scoped VMEM."""
    N, D = x.shape
    itemsize = x.dtype.itemsize

    D_pad = D if D % 128 == 0 else ((D + 127) // 128) * 128
    xp = x if D_pad == D else jnp.pad(x, ((0, 0), (0, D_pad - D)))

    cap_lanes = max(128, (_BLOCK_BYTE_BUDGET // max(1, t_n * itemsize)) // 128 * 128)
    t_d = 128 * _largest_divisor(D_pad // 128, min(D_pad, cap_lanes) // 128)
    grid = (N // t_n, D_pad // t_d)

    # Pass 1: per-row 1 / (||x|| + eps), accumulated across the D ('arbitrary', last) axis.
    inv = pl.pallas_call(
        functools.partial(_rownorm_accum_kernel, eps=eps),
        out_shape=jax.ShapeDtypeStruct((N, 1), jnp.float32),
        grid_spec=pl.GridSpec(
            grid=grid,
            in_specs=[pl.BlockSpec((t_n, t_d), lambda i, j: (i, j))],
            out_specs=pl.BlockSpec((t_n, 1), lambda i, j: (i, 0)),
        ),
        compiler_params=pltpu.CompilerParams(
            dimension_semantics=("parallel", "arbitrary"),
            vmem_limit_bytes=_VMEM_LIMIT,
        ),
    )(xp)

    # Pass 2: elementwise broadcast scale, both axes parallel.
    out = pl.pallas_call(
        _rowscale_kernel,
        out_shape=jax.ShapeDtypeStruct((N, D_pad), x.dtype),
        grid_spec=pl.GridSpec(
            grid=grid,
            in_specs=[pl.BlockSpec((t_n, t_d), lambda i, j: (i, j)),
                      pl.BlockSpec((t_n, 1), lambda i, j: (i, 0))],
            out_specs=pl.BlockSpec((t_n, t_d), lambda i, j: (i, j)),
        ),
        compiler_params=pltpu.CompilerParams(
            dimension_semantics=("parallel", "parallel"),
            vmem_limit_bytes=_VMEM_LIMIT,
        ),
        cost_estimate=_cost_estimate(N * D_pad, N, itemsize),
    )(xp, inv)
    return out if D_pad == D else out[:, :D]


def _l2n_2d(x, eps):
    N, D = x.shape
    itemsize = x.dtype.itemsize
    total_bytes = N * D * itemsize

    # Row tile: multiple of 8 (sublane) when N allows it, otherwise all rows in one block.
    if N % 8 == 0:
        max_tn = max(8, (_BLOCK_BYTE_BUDGET // max(1, D * itemsize)) // 8 * 8)
        t_n = 8 * _largest_divisor(N // 8, max_tn // 8)
        t_n = 8 * _shrink_for_min_steps(N // 8, t_n // 8, 1, total_bytes)
    else:
        t_n = N

    # ~4 live block buffers (double-buffered in/out) + f32 temporaries must fit scoped VMEM;
    # otherwise tile the reduction axis with the two-pass fallback instead of failing to compile.
    live_bytes = t_n * D * (4 * itemsize + 8)
    if live_bytes > _VMEM_LIMIT - 2 * _MIB:
        return _l2n_2d_two_pass(x, eps, t_n)

    grid = (N // t_n,)
    return pl.pallas_call(
        functools.partial(_l2n_2d_kernel, eps=eps),
        out_shape=jax.ShapeDtypeStruct((N, D), x.dtype),
        grid_spec=pl.GridSpec(
            grid=grid,
            in_specs=[pl.BlockSpec((t_n, D), lambda i: (i, 0))],
            out_specs=pl.BlockSpec((t_n, D), lambda i: (i, 0)),
        ),
        compiler_params=pltpu.CompilerParams(
            dimension_semantics=("parallel",),
            vmem_limit_bytes=_VMEM_LIMIT,
        ),
        cost_estimate=_cost_estimate(N * D, N, itemsize),
    )(x)


# ----------------------------------------------------------------------------- public API


def l2n(x, eps=1e-6):
    """L2-normalize x along dim=1 (NCHW channel axis, or feature axis for 2D input)."""
    if x.ndim == 2:
        return _l2n_2d(x, eps)
    orig_shape = x.shape
    n, c = x.shape[0], x.shape[1]
    xr = x.reshape(n, c, -1)
    out = _l2n_nchw(xr, eps)
    return out.reshape(orig_shape)


def l2n_channels_last(x, eps=1e-6):
    """L2-normalize over the LAST axis (for callers that can provide NHWC / (tokens, C)).

    Lane-dense loads/stores + an XLU lane reduce; preferred for small-spatial / large-C stages
    when the producer can emit channels-last."""
    orig_shape = x.shape
    x2 = x.reshape(-1, orig_shape[-1])
    return _l2n_2d(x2, eps).reshape(orig_shape)


if __name__ == "__main__":
    eps = 1e-6
    key = jax.random.PRNGKey(0)
    k1, k2, k3, k4, k5 = jax.random.split(key, 5)

    def ref_dim1(x):
        xf = x.astype(jnp.float32)
        n = jnp.sqrt(jnp.sum(xf * xf, axis=1, keepdims=True))
        return (xf / (n + eps)).astype(x.dtype)

    # NCHW conv feature map (lane-tileable HW), as in the module's forward.
    x4 = jax.random.normal(k1, (2, 4, 16, 16), dtype=jnp.float32)
    y4 = jax.block_until_ready(l2n(x4, eps=eps))
    assert y4.shape == x4.shape and y4.dtype == x4.dtype
    assert jnp.allclose(y4, ref_dim1(x4), atol=1e-5, rtol=1e-5)

    # NCHW with ragged spatial size (MobileNetV2 deep-stage style HW=49).
    x5 = jax.random.normal(k2, (2, 8, 7, 7), dtype=jnp.float32)
    y5 = jax.block_until_ready(l2n(x5, eps=eps))
    assert jnp.allclose(y5, ref_dim1(x5), atol=1e-5, rtol=1e-5)

    # bf16 NCHW (native-dtype scale path, f32 norm accumulation).
    x6 = jax.random.normal(k3, (2, 4, 16, 16), dtype=jnp.bfloat16)
    y6 = jax.block_until_ready(l2n(x6, eps=eps))
    assert y6.dtype == jnp.bfloat16
    assert jnp.allclose(y6.astype(jnp.float32), ref_dim1(x6).astype(jnp.float32),
                        atol=2e-2, rtol=2e-2)

    # 2D (N, D) embeddings — lane-dense layout, reduce along lanes.
    x2 = jax.random.normal(k4, (2, 32), dtype=jnp.float32)
    y2 = jax.block_until_ready(l2n(x2, eps=eps))
    assert y2.shape == x2.shape and y2.dtype == x2.dtype
    assert jnp.allclose(y2, ref_dim1(x2), atol=1e-5, rtol=1e-5)

    # Channels-last helper (normalize over the last axis).
    xc = jax.random.normal(k5, (2, 8, 8, 4), dtype=jnp.float32)
    yc = jax.block_until_ready(l2n_channels_last(xc, eps=eps))
    nc = jnp.sqrt(jnp.sum(xc * xc, axis=-1, keepdims=True))
    assert jnp.allclose(yc, xc / (nc + eps), atol=1e-5, rtol=1e-5)

    print("KERNEL_OK")
</pallas_src>

<mosaic_0001>
module attributes {stable_mosaic.version = 11 : i64} {
  func.func @_l2n_nchw_kernel(%arg0: i32, %arg1: i32, %arg2: memref<2x4x256xf32, #tpu.memory_space<vmem>>, %arg3: memref<2x4x256xf32, #tpu.memory_space<vmem>>) attributes {dimension_semantics = [#tpu.dimension_semantics<parallel>, #tpu.dimension_semantics<parallel>], iteration_bounds = array<i64: 1, 1>, scalar_prefetch = 0 : i64, scratch_operands = 0 : i64, tpu.core_type = #tpu.core_type<tc>, window_params = [{transform_indices = @transform_0, window_bounds = array<i64: 2, 4, 256>}, {transform_indices = @transform_1, window_bounds = array<i64: 2, 4, 256>}]} {
    %c0 = arith.constant 0 : index
    %c0_0 = arith.constant 0 : index
    %c0_1 = arith.constant 0 : index
    %0 = vector.load %arg2[%c0, %c0_0, %c0_1] : memref<2x4x256xf32, #tpu.memory_space<vmem>>, vector<2x4x256xf32>
    %1 = arith.mulf %0, %0 : vector<2x4x256xf32>
    %cst = arith.constant dense<0.000000e+00> : vector<2x256xf32>
    %2 = vector.multi_reduction <add>, %1, %cst [1] : vector<2x4x256xf32> to vector<2x256xf32>
    %3 = vector.shape_cast %2 : vector<2x256xf32> to vector<2x1x256xf32>
    %4 = math.sqrt %3 : vector<2x1x256xf32>
    %cst_2 = arith.constant 9.99999997E-7 : f32
    %5 = vector.broadcast %cst_2 : f32 to vector<2x1x256xf32>
    %6 = arith.addf %4, %5 : vector<2x1x256xf32>
    %7 = tpu.reciprocal %6 : vector<2x1x256xf32> -> vector<2x1x256xf32>
    %8 = vector.broadcast %7 : vector<2x1x256xf32> to vector<2x4x256xf32>
    %9 = arith.mulf %0, %8 : vector<2x4x256xf32>
    %c0_3 = arith.constant 0 : index
    %c0_4 = arith.constant 0 : index
    %c0_5 = arith.constant 0 : index
    %10 = vector.load %arg3[%c0_3, %c0_4, %c0_5] : memref<2x4x256xf32, #tpu.memory_space<vmem>>, vector<2x4x256xf32>
    tpu.vector_store %arg3[%c0_3, %c0_4, %c0_5], %9 {strides = array<i32>} : memref<2x4x256xf32, #tpu.memory_space<vmem>>, vector<2x4x256xf32>,
    return
  }
  func.func @transform_0(%arg0: i32, %arg1: i32) -> (i32, i32, i32) {
    %c0_i32 = arith.constant 0 : i32
    %c0_i32_0 = arith.constant 0 : i32
    return %arg0, %c0_i32, %arg1 : i32, i32, i32
  }
  func.func @transform_1(%arg0: i32, %arg1: i32) -> (i32, i32, i32) {
    %c0_i32 = arith.constant 0 : i32
    %c0_i32_0 = arith.constant 0 : i32
    return %arg0, %c0_i32, %arg1 : i32, i32, i32
  }
}

</mosaic_0001>

<llo_original>
// kernel: tpu_custom_call.1
$region0: #{tpu_custom_call.1}
  #allocation0 [shape = 'u32[]', space=smem, size = 0x4, offset = 0x4, fixed_abs, tag = 'smem constant byte address 0x4 - core index']
  #allocation1 [shape = 'u32[144,128]{1,0:T(1,128)}', space=vmem, size = 0x12000, scoped, tag = 'internal scratch']
  %s0 = inlined_call_operand.hbm [shape: f32[2,4,256], index: 0, kind: input, shape index: {}]
  %s1 = inlined_call_operand.hbm [shape: f32[2,4,256], index: 1, kind: output, shape index: {}]
  %s2 = sld [smem:[#allocation0]]
  $region18: #{tpu_custom_call.1} parent=0
    _
  %s4 = ssub.s32 1, %s2
  %s5 = scalar_select 0, %s4, %s2
  $region1: #{tpu_custom_call.1} parent=0
    #allocation2 [shape = 'u8[8192]{0}', space=vmem, size = 0x2000, scoped, tag = 'input window, operand 0, single buffered']
    #allocation3 [shape = 's32[1]{0}', space=sflag, size = 0x4, scoped, tag = 'scoped memory for tpu_custom_call.1']
    #allocation4 [shape = 's32[1]{0}', space=sflag, size = 0x4, scoped, tag = 'scoped memory for tpu_custom_call.1']
    #allocation5 [shape = 'u8[8192]{0}', space=vmem, size = 0x2000, scoped, tag = 'output window, operand 0, single buffered']
    %6 = vsyncpa [#allocation3], 0
    %7 = vsyncpa [#allocation4], 0
    // Predicated region
    $region2: #{tpu_custom_call.1} parent=1 // pred_check
      _
    $region3: #{tpu_custom_call.1} parent=1 // pred_check_branch
      %9 = sbr.rel (0) target = $region5
    $region4: #{tpu_custom_call.1} parent=1 // pred_region
      %s11 = ssub.s32 256, 256
      %12 = vsyncadd [#allocation3], %s11
      %s13 = sshll.u32 [#allocation2], 4
      %s14 = int_to_ptr.vmem [resolvable:$true] %s13
      %19 = dma.hbm_to_vmem [thread:$0]  %s0, 256, %s14, [#allocation3], 128, 128, 8
    $region5: #{tpu_custom_call.1} parent=1 // pred_fallthru
      _
    // Predicated region
    $region6: #{tpu_custom_call.1} parent=1 // pred_check
      _
    $region7: #{tpu_custom_call.1} parent=1 // pred_check_branch
      %21 = sbr.rel (0) target = $region9
    $region8: #{tpu_custom_call.1} parent=1 // pred_region
      %22 = dma.done [#allocation3], 256
    $region9: #{tpu_custom_call.1} parent=1 // pred_fallthru
      _
    %v23 = vld [vmem:[#allocation2] sm:$0xff]
    %v24 = vld [vmem:[#allocation2 + $0x8] sm:$0xff]
    %v25 = vmul.f32 %v23, %v23
    %v26 = vmul.f32 %v24, %v24
    %v29 = vcombine.high %v25, %v25
    %v30 = vcombine.high %v26, %v26
    %vm33 = vcmask 1043456
    %v34 = vsel %vm33, %v25, 0.0
    %v35 = vrot.slane %v34, 4
    %v36 = vadd.f32 %v34, %v35
    %v37 = vrot.slane %v36, 2
    %v38 = vadd.f32 %v36, %v37
    %v39 = vrot.slane %v38, 1
    %v40 = vadd.f32 %v38, %v39
    %v41 = vsel %vm33, %v29, 0.0
    %v42 = vrot.slane %v41, 4
    %v43 = vadd.f32 %v41, %v42
    %v44 = vrot.slane %v43, 2
    %v45 = vadd.f32 %v43, %v44
    %v46 = vrot.slane %v45, 1
    %v47 = vadd.f32 %v45, %v46
    %v48 = vsel %vm33, %v26, 0.0
    %v49 = vrot.slane %v48, 4
    %v50 = vadd.f32 %v48, %v49
    %v51 = vrot.slane %v50, 2
    %v52 = vadd.f32 %v50, %v51
    %v53 = vrot.slane %v52, 1
    %v54 = vadd.f32 %v52, %v53
    %v55 = vsel %vm33, %v30, 0.0
    %v56 = vrot.slane %v55, 4
    %v57 = vadd.f32 %v55, %v56
    %v58 = vrot.slane %v57, 2
    %v59 = vadd.f32 %v57, %v58
    %v60 = vrot.slane %v59, 1
    %v61 = vadd.f32 %v59, %v60
    %v62 = vrsqrt.pop %v40
    %v63 = vmul.f32 %v40, %v62
    %vm64 = vcmp.eq.f32.partialorder %v40, inf
    %v65 = vsel %vm64, %v40, %v63
    %vm66 = vcmp.eq.f32.partialorder %v40, 0.0
    %v67 = vand.u32 %v40, 2147483648
    %v68 = vsel %vm66, %v67, %v65
    %v69 = vrsqrt.pop %v47
    %v70 = vmul.f32 %v47, %v69
    %vm71 = vcmp.eq.f32.partialorder %v47, inf
    %v72 = vsel %vm71, %v47, %v70
    %vm73 = vcmp.eq.f32.partialorder %v47, 0.0
    %v74 = vand.u32 %v47, 2147483648
    %v75 = vsel %vm73, %v74, %v72
    %v76 = vrsqrt.pop %v54
    %v77 = vmul.f32 %v54, %v76
    %vm78 = vcmp.eq.f32.partialorder %v54, inf
    %v79 = vsel %vm78, %v54, %v77
    %vm80 = vcmp.eq.f32.partialorder %v54, 0.0
    %v81 = vand.u32 %v54, 2147483648
    %v82 = vsel %vm80, %v81, %v79
    %v83 = vrsqrt.pop %v61
    %v84 = vmul.f32 %v61, %v83
    %vm85 = vcmp.eq.f32.partialorder %v61, inf
    %v86 = vsel %vm85, %v61, %v84
    %vm87 = vcmp.eq.f32.partialorder %v61, 0.0
    %v88 = vand.u32 %v61, 2147483648
    %v89 = vsel %vm87, %v88, %v86
    %v90 = vadd.f32 %v68, 1e-06
    %v91 = vadd.f32 %v75, 1e-06
    %v92 = vadd.f32 %v82, 1e-06
    %v93 = vadd.f32 %v89, 1e-06
    %v94 = vrcp.pop %v90
    %v95 = vrcp.pop %v91
    %v96 = vrcp.pop %v92
    %v97 = vrcp.pop %v93
    %v102 = vcombine.low %v94, %v95
    %v103 = vcombine.low %v96, %v97
    %v106 = vmul.f32 %v23, %v102
    %v107 = vmul.f32 %v24, %v103
    %108 = vst [vmem:[#allocation5] sm:$0xff] %v106
    %109 = vst [vmem:[#allocation5 + $0x8] sm:$0xff] %v107
    // Predicated region
    $region10: #{tpu_custom_call.1} parent=1 // pred_check
      _
    $region11: #{tpu_custom_call.1} parent=1 // pred_check_branch
      %111 = sbr.rel (0) target = $region13
    $region12: #{tpu_custom_call.1} parent=1 // pred_region
      %s113 = ssub.s32 256, 256
      %114 = vsyncadd [#allocation4], %s113
      %s115 = sshll.u32 [#allocation5], 4
      %s116 = int_to_ptr.vmem [resolvable:$true] %s115
      %121 = dma.vmem_to_hbm [thread:$0]  %s116, 256, %s1, [#allocation4], 128, 128, 8
    $region13: #{tpu_custom_call.1} parent=1 // pred_fallthru
      _
    // Predicated region
    $region14: #{tpu_custom_call.1} parent=1 // pred_check
      _
    $region15: #{tpu_custom_call.1} parent=1 // pred_check_branch
      %123 = sbr.rel (0) target = $region17
    $region16: #{tpu_custom_call.1} parent=1 // pred_region
      %124 = dma.done [#allocation4], 256
    $region17: #{tpu_custom_call.1} parent=1 // pred_fallthru
      _
    %125 = vsyncpa [#allocation3], 1
    %126 = vsyncpa [#allocation4], 1

</llo_original>
